<compile_context>
chip_gen: v7x
topology: tpu7x:2x2x1
jax: 0.10.0
libtpu: 0.0.40
codegen_flags: <defaults>
</compile_context>

<pallas_src>
import functools

import jax
import jax.numpy as jnp
from jax.experimental import pallas as pl
from jax.experimental.pallas import tpu as pltpu


# ----------------------------------------------------------------------------- kernel

def embed_ln_kernel(p_ref, w_ref, prm_ref, o_ref, *, eps):
    # p_ref:   (tm, K)  im2col patches for tm output tokens
    # w_ref:   (K, E)   conv weight as a matmul operand (VMEM-resident)
    # prm_ref: (3, E)   f32 rows: [conv bias, LN gamma, LN beta]
    # o_ref:   (tm, E)
    acc = jnp.dot(p_ref[...], w_ref[...], preferred_element_type=jnp.float32)
    y = acc + prm_ref[0:1, :]                                  # conv bias
    # Fused LayerNorm epilogue (f32 statistics).
    mean = jnp.mean(y, axis=-1, keepdims=True)
    var = jnp.mean(jnp.square(y - mean), axis=-1, keepdims=True)
    yn = (y - mean) * jax.lax.rsqrt(var + eps)
    o_ref[...] = (yn * prm_ref[1:2, :] + prm_ref[2:3, :]).astype(o_ref.dtype)


# ----------------------------------------------------------------------------- wrapper

def overlap_patch_embed(x, w, b, gamma, beta, *, patch_size=7, stride=4,
                        eps=1e-5, tm_target=256):
    """x: (B, C_in, H, W) NCHW. w: (E, C_in, k, k). Returns ((B, N, E), H_out, W_out)."""
    B, Cin, Himg, Wimg = x.shape
    E = w.shape[0]
    pad = patch_size // 2
    Hout = (Himg + 2 * pad - patch_size) // stride + 1
    Wout = (Wimg + 2 * pad - patch_size) // stride + 1
    N = Hout * Wout
    K = patch_size * patch_size * Cin
    M = B * N

    # --- im2col of the small input (XLA): (B*N, K) with index order (tap, c_in).
    x_nhwc = jnp.transpose(x, (0, 2, 3, 1))
    xp = jnp.pad(x_nhwc, ((0, 0), (pad, pad), (pad, pad), (0, 0)))
    taps = []
    for di in range(patch_size):
        for dj in range(patch_size):
            taps.append(xp[:, di:di + stride * Hout:stride,
                            dj:dj + stride * Wout:stride, :])
    patches = jnp.stack(taps, axis=3).reshape(M, K)            # (B*N, 49*C_in)

    # Conv weight (E, C_in, k, k) -> (K, E) matching the (tap, c_in) ordering.
    w_mat = jnp.transpose(w, (2, 3, 1, 0)).reshape(K, E)

    # bias / gamma / beta as one f32 slab -> single resident VMEM operand.
    params = jnp.stack([b, gamma, beta], axis=0).astype(jnp.float32)   # (3, E)

    # --- token-tile size: multiple of 8, at least 2 grid steps when possible
    # (so megacore / both TensorCores can share the work).  Pad M if ragged.
    if M > tm_target:
        tm = tm_target
    else:
        tm = max(8, ((((M + 1) // 2) + 7) // 8) * 8)
    grid_m = (M + tm - 1) // tm
    M_pad = grid_m * tm
    if M_pad != M:
        patches = jnp.pad(patches, ((0, M_pad - M), (0, 0)))

    bytes_acc = (M_pad * K + K * E + M_pad * E + 3 * E) * 4
    out2d = pl.pallas_call(
        functools.partial(embed_ln_kernel, eps=eps),
        out_shape=jax.ShapeDtypeStruct((M_pad, E), x.dtype),
        grid=(grid_m,),
        in_specs=[pl.BlockSpec((tm, K), lambda i: (i, 0)),   # token tile of patches
                  pl.BlockSpec((K, E), lambda i: (0, 0)),    # conv weight (resident)
                  pl.BlockSpec((3, E), lambda i: (0, 0))],   # bias / gamma / beta
        out_specs=pl.BlockSpec((tm, E), lambda i: (i, 0)),
        compiler_params=pltpu.CompilerParams(
            dimension_semantics=("parallel",)),
        cost_estimate=pl.CostEstimate(flops=2 * M_pad * K * E,
                                      transcendentals=0,
                                      bytes_accessed=bytes_acc),
    )(patches, w_mat, params)

    if M_pad != M:
        out2d = out2d[:M]
    return out2d.reshape(B, N, E), Hout, Wout


# ----------------------------------------------------------------------------- reference (plain JAX)

def overlap_patch_embed_reference(x, w, b, gamma, beta, patch_size, stride, eps=1e-5):
    pad = patch_size // 2
    y = jax.lax.conv_general_dilated(
        x, w, window_strides=(stride, stride),
        padding=((pad, pad), (pad, pad)),
        dimension_numbers=("NCHW", "OIHW", "NCHW"))
    y = y + b[None, :, None, None]
    B, E, Ho, Wo = y.shape
    t = jnp.transpose(y.reshape(B, E, Ho * Wo), (0, 2, 1))    # (B, N, E)
    mu = jnp.mean(t, axis=-1, keepdims=True)
    var = jnp.mean((t - mu) ** 2, axis=-1, keepdims=True)
    return (t - mu) / jnp.sqrt(var + eps) * gamma + beta, Ho, Wo


# ----------------------------------------------------------------------------- main

if __name__ == "__main__":
    # Small shapes consistent with the module: B=2, in_chans=3, 64x64 image,
    # patch_size=7, stride=4, embed_dim=128  ->  H_out = W_out = 16, N = 256.
    B, Cin, Himg, Wimg = 2, 3, 64, 64
    patch_size, stride, E = 7, 4, 128

    key = jax.random.PRNGKey(0)
    kx, kw, kb, kg, kbeta = jax.random.split(key, 5)
    x = jax.random.normal(kx, (B, Cin, Himg, Wimg), jnp.float32)
    w = (0.02 * jax.random.normal(kw, (E, Cin, patch_size, patch_size))).astype(jnp.float32)
    b = (0.02 * jax.random.normal(kb, (E,))).astype(jnp.float32)
    gamma = (1.0 + 0.02 * jax.random.normal(kg, (E,))).astype(jnp.float32)
    beta = (0.02 * jax.random.normal(kbeta, (E,))).astype(jnp.float32)

    out, Hout, Wout = overlap_patch_embed(
        x, w, b, gamma, beta, patch_size=patch_size, stride=stride)
    jax.block_until_ready(out)

    out_ref, Hr, Wr = overlap_patch_embed_reference(
        x, w, b, gamma, beta, patch_size, stride)

    assert (Hout, Wout) == (Hr, Wr), ((Hout, Wout), (Hr, Wr))
    assert out.shape == (B, Hout * Wout, E), out.shape
    max_err = float(jnp.max(jnp.abs(out - out_ref)))
    assert jnp.allclose(out, out_ref, atol=1e-3, rtol=1e-3), max_err

    print("KERNEL_OK")
</pallas_src>

<mosaic_0001>
module attributes {stable_mosaic.version = 11 : i64} {
  func.func @embed_ln_kernel(%arg0: i32, %arg1: memref<256x147xf32, #tpu.memory_space<vmem>>, %arg2: memref<147x128xf32, #tpu.memory_space<vmem>>, %arg3: memref<3x128xf32, #tpu.memory_space<vmem>>, %arg4: memref<256x128xf32, #tpu.memory_space<vmem>>) attributes {dimension_semantics = [#tpu.dimension_semantics<parallel>], iteration_bounds = array<i64: 2>, scalar_prefetch = 0 : i64, scratch_operands = 0 : i64, tpu.core_type = #tpu.core_type<tc>, window_params = [{transform_indices = @transform_0, window_bounds = array<i64: 256, 147>}, {pipeline_mode = #tpu.pipeline_mode<synchronous>, transform_indices = @transform_1, window_bounds = array<i64: 147, 128>}, {pipeline_mode = #tpu.pipeline_mode<synchronous>, transform_indices = @transform_2, window_bounds = array<i64: 3, 128>}, {transform_indices = @transform_3, window_bounds = array<i64: 256, 128>}]} {
    %c0 = arith.constant 0 : index
    %c0_0 = arith.constant 0 : index
    %0 = vector.load %arg1[%c0, %c0_0] : memref<256x147xf32, #tpu.memory_space<vmem>>, vector<256x147xf32>
    %c0_1 = arith.constant 0 : index
    %c0_2 = arith.constant 0 : index
    %1 = vector.load %arg2[%c0_1, %c0_2] : memref<147x128xf32, #tpu.memory_space<vmem>>, vector<147x128xf32>
    %cst = arith.constant dense<0.000000e+00> : vector<256x128xf32>
    %2 = tpu.matmul %0, %1, %cst {dimension_numbers = #tpu.dot_dimension_numbers<[1], [0], [0], [1], [0, 0, 1, 1], [], []>} : vector<256x147xf32>, vector<147x128xf32>, vector<256x128xf32> -> vector<256x128xf32>
    %c0_3 = arith.constant 0 : index
    %c0_4 = arith.constant 0 : index
    %3 = vector.load %arg3[%c0_3, %c0_4] : memref<3x128xf32, #tpu.memory_space<vmem>>, vector<1x128xf32>
    %4 = vector.broadcast %3 : vector<1x128xf32> to vector<256x128xf32>
    %5 = arith.addf %2, %4 : vector<256x128xf32>
    %cst_5 = arith.constant dense<0.000000e+00> : vector<256xf32>
    %6 = vector.multi_reduction <add>, %5, %cst_5 [1] : vector<256x128xf32> to vector<256xf32>
    %7 = vector.shape_cast %6 : vector<256xf32> to vector<256x1xf32>
    %cst_6 = arith.constant 1.280000e+02 : f32
    %8 = vector.broadcast %cst_6 : f32 to vector<256x1xf32>
    %9 = arith.divf %7, %8 : vector<256x1xf32>
    %10 = vector.broadcast %9 : vector<256x1xf32> to vector<256x128xf32>
    %11 = arith.subf %5, %10 : vector<256x128xf32>
    %12 = arith.mulf %11, %11 : vector<256x128xf32>
    %cst_7 = arith.constant dense<0.000000e+00> : vector<256xf32>
    %13 = vector.multi_reduction <add>, %12, %cst_7 [1] : vector<256x128xf32> to vector<256xf32>
    %14 = vector.shape_cast %13 : vector<256xf32> to vector<256x1xf32>
    %cst_8 = arith.constant 1.280000e+02 : f32
    %15 = vector.broadcast %cst_8 : f32 to vector<256x1xf32>
    %16 = arith.divf %14, %15 : vector<256x1xf32>
    %17 = vector.broadcast %9 : vector<256x1xf32> to vector<256x128xf32>
    %18 = arith.subf %5, %17 : vector<256x128xf32>
    %cst_9 = arith.constant 9.99999974E-6 : f32
    %19 = vector.broadcast %cst_9 : f32 to vector<256x1xf32>
    %20 = arith.addf %16, %19 : vector<256x1xf32>
    %21 = math.rsqrt %20 : vector<256x1xf32>
    %22 = vector.broadcast %21 : vector<256x1xf32> to vector<256x128xf32>
    %23 = arith.mulf %18, %22 : vector<256x128xf32>
    %c1 = arith.constant 1 : index
    %c0_10 = arith.constant 0 : index
    %24 = vector.load %arg3[%c1, %c0_10] : memref<3x128xf32, #tpu.memory_space<vmem>>, vector<1x128xf32>
    %25 = vector.broadcast %24 : vector<1x128xf32> to vector<256x128xf32>
    %26 = arith.mulf %23, %25 : vector<256x128xf32>
    %c2 = arith.constant 2 : index
    %c0_11 = arith.constant 0 : index
    %27 = vector.load %arg3[%c2, %c0_11] : memref<3x128xf32, #tpu.memory_space<vmem>>, vector<1x128xf32>
    %28 = vector.broadcast %27 : vector<1x128xf32> to vector<256x128xf32>
    %29 = arith.addf %26, %28 : vector<256x128xf32>
    %c0_12 = arith.constant 0 : index
    %c0_13 = arith.constant 0 : index
    %30 = vector.load %arg4[%c0_12, %c0_13] : memref<256x128xf32, #tpu.memory_space<vmem>>, vector<256x128xf32>
    tpu.vector_store %arg4[%c0_12, %c0_13], %29 {strides = array<i32>} : memref<256x128xf32, #tpu.memory_space<vmem>>, vector<256x128xf32>,
    return
  }
  func.func @transform_0(%arg0: i32) -> (i32, i32) {
    %c0_i32 = arith.constant 0 : i32
    %c0_i32_0 = arith.constant 0 : i32
    return %arg0, %c0_i32 : i32, i32
  }
  func.func @transform_1(%arg0: i32) -> (i32, i32) {
    %c0_i32 = arith.constant 0 : i32
    %c0_i32_0 = arith.constant 0 : i32
    %c0_i32_1 = arith.constant 0 : i32
    return %c0_i32, %c0_i32_0 : i32, i32
  }
  func.func @transform_2(%arg0: i32) -> (i32, i32) {
    %c0_i32 = arith.constant 0 : i32
    %c0_i32_0 = arith.constant 0 : i32
    %c0_i32_1 = arith.constant 0 : i32
    return %c0_i32, %c0_i32_0 : i32, i32
  }
  func.func @transform_3(%arg0: i32) -> (i32, i32) {
    %c0_i32 = arith.constant 0 : i32
    %c0_i32_0 = arith.constant 0 : i32
    return %arg0, %c0_i32 : i32, i32
  }
}

</mosaic_0001>

<llo_original>
// kernel: tpu_custom_call.1
$region0: #{tpu_custom_call.1}
  #allocation0 [shape = 'u32[]', space=smem, size = 0x4, offset = 0x4, fixed_abs, tag = 'smem constant byte address 0x4 - core index']
  #allocation1 [shape = 'u32[144,128]{1,0:T(1,128)}', space=vmem, size = 0x12000, scoped, tag = 'internal scratch']
  %s0 = inlined_call_operand.vmem [shape: f32[512,147], index: 0, kind: input, shape index: {}]
  %s1 = inlined_call_operand.vmem [shape: f32[147,128], index: 1, kind: input, shape index: {}]
  %s2 = inlined_call_operand.vmem [shape: f32[3,128], index: 2, kind: input, shape index: {}]
  %s3 = inlined_call_operand.hbm [shape: f32[512,128], index: 3, kind: output, shape index: {}]
  %s4 = sld [smem:[#allocation0]]
  $region45: #{tpu_custom_call.1} parent=0
    _
  %s6 = ssub.s32 1, %s4
  %s7 = scalar_select 0, %s6, %s4
  $region1: #{tpu_custom_call.1} parent=0
    #allocation2 [shape = 'u8[262144]{0}', space=vmem, size = 0x40000, scoped, tag = 'output window, operand 0']
    #allocation3 [shape = 's32[2]{0}', space=sflag, size = 0x8, scoped, tag = 'scoped memory for tpu_custom_call.1']
    %8 = vsyncpa [#allocation3], 0
    %s9 = scalar_lea.sflag [#allocation3], 1
    %10 = vsyncpa %s9, 0
    loop: start=0, step=1, limit=4
    $region2: #{tpu_custom_call.1} parent=1 // loop_pre_header
      _
    $region3: #{tpu_custom_call.1} parent=1 // loop_header
      %s12 = sphi 0, %s16
      %p13 = scmp.ge.s32.totalorder %s12, 4
      %s22 = sphi 0, %s24
      %s25 = sphi 0, %s22
      %s26 = sphi 0, %s25
      %s42 = sphi 0, %s26
      %s46 = sphi 0, %s46
      %s48 = sphi 0, %s46
      %s49 = sphi 0, %s48
      %s63 = sphi 0, %s49
      %s67 = sphi 0, %s67
      %s69 = sphi 0, %s67
      %s70 = sphi 0, %s69
      %s84 = sphi 0, %s70
      %s90 = sphi 0, %s92
      %s93 = sphi 0, %s90
      %s94 = sphi 0, %s93
      %s110 = sphi 0, %s94
    $region4: #{tpu_custom_call.1} parent=1 // loop_header_branch
      %15 = sbr.rel (%p13) target = $region8
    $region5: #{tpu_custom_call.1} parent=1 // loop_body
      %s17 = ssub.s32 %s12, 1
      %s18 = ssub.s32 %s12, 2
      %s19 = sadd.s32 %s12, 1
      %s20 = ssub.s32 %s12, %s19
      %p21 = scmp.eq.s32.totalorder %s20, 0
      %s23 = sadd.s32 %s22, 1
      %s24 = scalar_select %p21, %s22, %s23
      %p27 = pneg %p21
      %p28 = scmp.eq.s32.totalorder %s12, 1
      %p29 = por %p27, %p28
      %p30 = scmp.ne.s32.totalorder %s22, %s25
      %p31 = scmp.eq.s32.totalorder %s12, 0
      %p32 = por %p30, %p31
      %p33 = scmp.ne.s32.totalorder %s22, %s25
      %p34 = scmp.eq.s32.totalorder %s17, 1
      %p35 = por %p33, %p34
      %p36 = scmp.ne.s32.totalorder %s25, %s26
      %p37 = scmp.eq.s32.totalorder %s17, 0
      %p38 = por %p36, %p37
      %p39 = scmp.ne.s32.totalorder %s25, %s26
      %p40 = scmp.eq.s32.totalorder %s18, 1
      %p41 = por %p39, %p40
      %p43 = scmp.ne.s32.totalorder %s26, %s42
      %p44 = scmp.eq.s32.totalorder %s18, 0
      %p45 = por %p43, %p44
      %s47 = sadd.s32 %s46, 1
      %p50 = scmp.eq.s32.totalorder %s12, 1
      %p51 = scmp.ne.s32.totalorder %s46, %s48
      %p52 = scmp.eq.s32.totalorder %s12, 0
      %p53 = por %p51, %p52
      %p54 = scmp.ne.s32.totalorder %s46, %s48
      %p55 = scmp.eq.s32.totalorder %s17, 1
      %p56 = por %p54, %p55
      %p57 = scmp.ne.s32.totalorder %s48, %s49
      %p58 = scmp.eq.s32.totalorder %s17, 0
      %p59 = por %p57, %p58
      %p60 = scmp.ne.s32.totalorder %s48, %s49
      %p61 = scmp.eq.s32.totalorder %s18, 1
      %p62 = por %p60, %p61
      %p64 = scmp.ne.s32.totalorder %s49, %s63
      %p65 = scmp.eq.s32.totalorder %s18, 0
      %p66 = por %p64, %p65
      %s68 = sadd.s32 %s67, 1
      %p71 = scmp.eq.s32.totalorder %s12, 1
      %p72 = scmp.ne.s32.totalorder %s67, %s69
      %p73 = scmp.eq.s32.totalorder %s12, 0
      %p74 = por %p72, %p73
      %p75 = scmp.ne.s32.totalorder %s67, %s69
      %p76 = scmp.eq.s32.totalorder %s17, 1
      %p77 = por %p75, %p76
      %p78 = scmp.ne.s32.totalorder %s69, %s70
      %p79 = scmp.eq.s32.totalorder %s17, 0
      %p80 = por %p78, %p79
      %p81 = scmp.ne.s32.totalorder %s69, %s70
      %p82 = scmp.eq.s32.totalorder %s18, 1
      %p83 = por %p81, %p82
      %p85 = scmp.ne.s32.totalorder %s70, %s84
      %p86 = scmp.eq.s32.totalorder %s18, 0
      %p87 = por %p85, %p86
      %s88 = ssub.s32 %s12, %s19
      %p89 = scmp.eq.s32.totalorder %s88, 0
      %s91 = sadd.s32 %s90, 1
      %s92 = scalar_select %p89, %s90, %s91
      %p95 = pneg %p89
      %p96 = scmp.eq.s32.totalorder %s12, 1
      %p97 = por %p95, %p96
      %p98 = scmp.ne.s32.totalorder %s90, %s93
      %p99 = scmp.eq.s32.totalorder %s12, 0
      %p100 = por %p98, %p99
      %p101 = scmp.ne.s32.totalorder %s90, %s93
      %p102 = scmp.eq.s32.totalorder %s17, 1
      %p103 = por %p101, %p102
      %p104 = scmp.ne.s32.totalorder %s93, %s94
      %p105 = scmp.eq.s32.totalorder %s17, 0
      %p106 = por %p104, %p105
      %p107 = scmp.ne.s32.totalorder %s93, %s94
      %p108 = scmp.eq.s32.totalorder %s18, 1
      %p109 = por %p107, %p108
      %p111 = scmp.ne.s32.totalorder %s94, %s110
      %p112 = scmp.eq.s32.totalorder %s18, 0
      %p113 = por %p111, %p112
      %p114 = scmp.le.s32.totalorder 1, %s12
      %p115 = scmp.lt.s32.totalorder %s12, 3
      %p116 = pnand %p114, %p115
      %p117 = pneg %p116
      // Predicated region
      $region9: #{tpu_custom_call.1} parent=5 // pred_check
        _
      $region10: #{tpu_custom_call.1} parent=5 // pred_check_branch
        %119 = sbr.rel (%p116) target = $region12
      $region11: #{tpu_custom_call.1} parent=5 // pred_region
        %s120 = ssub.s32 %s12, 1
        // Predicated region
        $region13: #{tpu_custom_call.1} parent=11 // pred_check
          %p121 = pneg %p59
        $region14: #{tpu_custom_call.1} parent=11 // pred_check_branch
          %123 = sbr.rel (%p121) target = $region16
        $region15: #{tpu_custom_call.1} parent=11 // pred_region
          _
        $region16: #{tpu_custom_call.1} parent=11 // pred_fallthru
          _
        // Predicated region
        $region17: #{tpu_custom_call.1} parent=11 // pred_check
          %p124 = pneg %p80
        $region18: #{tpu_custom_call.1} parent=11 // pred_check_branch
          %126 = sbr.rel (%p124) target = $region20
        $region19: #{tpu_custom_call.1} parent=11 // pred_region
          _
        $region20: #{tpu_custom_call.1} parent=11 // pred_fallthru
          _
      $region12: #{tpu_custom_call.1} parent=5 // pred_fallthru
        _
      %p127 = scmp.lt.s32.totalorder %s12, 2
      // Predicated region
      $region21: #{tpu_custom_call.1} parent=5 // pred_check
        %p128 = pneg %p127
      $region22: #{tpu_custom_call.1} parent=5 // pred_check_branch
        %130 = sbr.rel (%p128) target = $region24
      $region23: #{tpu_custom_call.1} parent=5 // pred_region
        // Predicated region
        $region25: #{tpu_custom_call.1} parent=23 // pred_check
          %p131 = pneg %p32
        $region26: #{tpu_custom_call.1} parent=23 // pred_check_branch
          %133 = sbr.rel (%p131) target = $region28
        $region27: #{tpu_custom_call.1} parent=23 // pred_region
          %s134 = smul.u32 32, %s12
          %p135 = scmp.lt.s32.totalorder %s134, 63
          %s136 = scalar_select %p135, %s134, 63
          %s137 = smul.addr %s136, 2
          %s138 = smul.addr %s137, 8
          %s139 = scalar_lea.vmem %s0, %s138
          %s140 = smul.u32 32, %s12
        $region28: #{tpu_custom_call.1} parent=23 // pred_fallthru
          _
      $region24: #{tpu_custom_call.1} parent=5 // pred_fallthru
        _
      %p141 = scmp.le.s32.totalorder 1, %s12
      %p142 = scmp.lt.s32.totalorder %s12, 3
      %p143 = pnand %p141, %p142
      %p144 = pneg %p143
      // Predicated region
      $region29: #{tpu_custom_call.1} parent=5 // pred_check
        _
      $region30: #{tpu_custom_call.1} parent=5 // pred_check_branch
        %146 = sbr.rel (%p143) target = $region32
      $region31: #{tpu_custom_call.1} parent=5 // pred_region
        %s147 = ssub.s32 %s12, 1
        %s148 = smul.u32 32, %s17
        %p149 = scmp.lt.s32.totalorder %s148, 63
        %s150 = scalar_select %p149, %s148, 63
        %s151 = smul.addr %s150, 2
        %s152 = smul.addr %s151, 8
        %s153 = scalar_lea.vmem %s0, %s152
        %p154 = pneg %p38
        %p155 = pneg %p35
        %p156 = pneg %p59
        %p157 = pneg %p56
        %p158 = pneg %p80
        %p159 = pneg %p77
        %p160 = pneg %p106
        %p161 = pneg %p103
        %s162 = sand.u32 %s93, 1
        %s163 = scalar_lea.sflag [#allocation3], %s162
        %s164 = sand.u32 %s93, 1
        %s165 = smul.addr %s164, 256
        %s166 = scalar_lea.vmem [#allocation2], %s165
        %s167 = smul.u32 32, %s17
        %p168 = scmp.lt.s32.totalorder %s167, 63
        %s169 = scalar_select %p168, %s167, 63
        %s170 = smul.addr %s169, 2
        %s171 = smul.addr %s170, 8
        %s172 = scalar_lea.vmem %s0, %s171
        %s173 = smul.u32 32, %s17
        %s174 = smul.u32 32, %s17
        %v175 = vld [vmem:[%s172] sm:$0xff]
        %v176 = vld [vmem:[%s172 + $0x8] sm:$0xff]
        %v177 = vld [vmem:[%s172 + $0x10] sm:$0xff]
        %v178 = vld [vmem:[%s172 + $0x18] sm:$0xff]
        %v179 = vld [vmem:[%s172 + $0x20] sm:$0xff]
        %v180 = vld [vmem:[%s172 + $0x28] sm:$0xff]
        %v181 = vld [vmem:[%s172 + $0x30] sm:$0xff]
        %v182 = vld [vmem:[%s172 + $0x38] sm:$0xff]
        %v183 = vld [vmem:[%s172 + $0x40] sm:$0xff]
        %v184 = vld [vmem:[%s172 + $0x48] sm:$0xff]
        %v185 = vld [vmem:[%s172 + $0x50] sm:$0xff]
        %v186 = vld [vmem:[%s172 + $0x58] sm:$0xff]
        %v187 = vld [vmem:[%s172 + $0x60] sm:$0xff]
        %v188 = vld [vmem:[%s172 + $0x68] sm:$0xff]
        %v189 = vld [vmem:[%s172 + $0x70] sm:$0xff]
        %v190 = vld [vmem:[%s172 + $0x78] sm:$0xff]
        %v191 = vld [vmem:[%s172 + $0x80] sm:$0xff]
        %v192 = vld [vmem:[%s172 + $0x88] sm:$0xff]
        %v193 = vld [vmem:[%s172 + $0x90] sm:$0xff]
        %v194 = vld [vmem:[%s172 + $0x98] sm:$0xff]
        %v195 = vld [vmem:[%s172 + $0xa0] sm:$0xff]
        %v196 = vld [vmem:[%s172 + $0xa8] sm:$0xff]
        %v197 = vld [vmem:[%s172 + $0xb0] sm:$0xff]
        %v198 = vld [vmem:[%s172 + $0xb8] sm:$0xff]
        %v199 = vld [vmem:[%s172 + $0xc0] sm:$0xff]
        %v200 = vld [vmem:[%s172 + $0xc8] sm:$0xff]
        %v201 = vld [vmem:[%s172 + $0xd0] sm:$0xff]
        %v202 = vld [vmem:[%s172 + $0xd8] sm:$0xff]
        %v203 = vld [vmem:[%s172 + $0xe0] sm:$0xff]
        %v204 = vld [vmem:[%s172 + $0xe8] sm:$0xff]
        %v205 = vld [vmem:[%s172 + $0xf0] sm:$0xff]
        %v206 = vld [vmem:[%s172 + $0xf8] sm:$0xff]
        %v207 = vld [vmem:[%s172 + $0x100] sm:$0xff]
        %v208 = vld [vmem:[%s172 + $0x108] sm:$0xff]
        %v209 = vld [vmem:[%s172 + $0x110] sm:$0xff]
        %v210 = vld [vmem:[%s172 + $0x118] sm:$0xff]
        %v211 = vld [vmem:[%s172 + $0x120] sm:$0xff]
        %v212 = vld [vmem:[%s172 + $0x128] sm:$0xff]
        %v213 = vld [vmem:[%s172 + $0x130] sm:$0xff]
        %v214 = vld [vmem:[%s172 + $0x138] sm:$0xff]
        %v215 = vld [vmem:[%s172 + $0x140] sm:$0xff]
        %v216 = vld [vmem:[%s172 + $0x148] sm:$0xff]
        %v217 = vld [vmem:[%s172 + $0x150] sm:$0xff]
        %v218 = vld [vmem:[%s172 + $0x158] sm:$0xff]
        %v219 = vld [vmem:[%s172 + $0x160] sm:$0xff]
        %v220 = vld [vmem:[%s172 + $0x168] sm:$0xff]
        %v221 = vld [vmem:[%s172 + $0x170] sm:$0xff]
        %v222 = vld [vmem:[%s172 + $0x178] sm:$0xff]
        %v223 = vld [vmem:[%s172 + $0x180] sm:$0xff]
        %v224 = vld [vmem:[%s172 + $0x188] sm:$0xff]
        %v225 = vld [vmem:[%s172 + $0x190] sm:$0xff]
        %v226 = vld [vmem:[%s172 + $0x198] sm:$0xff]
        %v227 = vld [vmem:[%s172 + $0x1a0] sm:$0xff]
        %v228 = vld [vmem:[%s172 + $0x1a8] sm:$0xff]
        %v229 = vld [vmem:[%s172 + $0x1b0] sm:$0xff]
        %v230 = vld [vmem:[%s172 + $0x1b8] sm:$0xff]
        %v231 = vld [vmem:[%s172 + $0x1c0] sm:$0xff]
        %v232 = vld [vmem:[%s172 + $0x1c8] sm:$0xff]
        %v233 = vld [vmem:[%s172 + $0x1d0] sm:$0xff]
        %v234 = vld [vmem:[%s172 + $0x1d8] sm:$0xff]
        %v235 = vld [vmem:[%s172 + $0x1e0] sm:$0xff]
        %v236 = vld [vmem:[%s172 + $0x1e8] sm:$0xff]
        %v237 = vld [vmem:[%s172 + $0x1f0] sm:$0xff]
        %v238 = vld [vmem:[%s172 + $0x1f8] sm:$0xff]
        %v239 = vld [vmem:[%s1] sm:$0xff]
        %v240 = vld [vmem:[%s1 + $0x8] sm:$0xff]
        %v241 = vld [vmem:[%s1 + $0x10] sm:$0xff]
        %v242 = vld [vmem:[%s1 + $0x18] sm:$0xff]
        %v243 = vld [vmem:[%s1 + $0x20] sm:$0xff]
        %v244 = vld [vmem:[%s1 + $0x28] sm:$0xff]
        %v245 = vld [vmem:[%s1 + $0x30] sm:$0xff]
        %v246 = vld [vmem:[%s1 + $0x38] sm:$0xff]
        %v247 = vld [vmem:[%s1 + $0x40] sm:$0xff]
        %v248 = vld [vmem:[%s1 + $0x48] sm:$0xff]
        %v249 = vld [vmem:[%s1 + $0x50] sm:$0xff]
        %v250 = vld [vmem:[%s1 + $0x58] sm:$0xff]
        %v251 = vld [vmem:[%s1 + $0x60] sm:$0xff]
        %v252 = vld [vmem:[%s1 + $0x68] sm:$0xff]
        %v253 = vld [vmem:[%s1 + $0x70] sm:$0xff]
        %v254 = vld [vmem:[%s1 + $0x78] sm:$0xff]
        %v255 = vld [vmem:[%s1 + $0x80] sm:$0xff]
        %v256 = vld [vmem:[%s1 + $0x88] sm:$0xff]
        %v257 = vld [vmem:[%s1 + $0x90] sm:$0x7]
        %v258 = vld [vmem:[%s2] sm:$0x1]
        %v259 = vlaneseq
        %v260 = vshrl.u32 %v259, 7
        %v261 = vsub.s32 0, %v260
        %v262 = vrot.slane %v258, %v261
        %vm263 = vcmask 154624
        %v265 = vsel %vm263, %v176, 0
        %v268 = vsel %vm263, %v178, 0
        %v271 = vsel %vm263, %v180, 0
        %v274 = vsel %vm263, %v182, 0
        %v277 = vsel %vm263, %v184, 0
        %v280 = vsel %vm263, %v186, 0
        %v283 = vsel %vm263, %v188, 0
        %v286 = vsel %vm263, %v190, 0
        %v289 = vsel %vm263, %v192, 0
        %v292 = vsel %vm263, %v194, 0
        %v295 = vsel %vm263, %v196, 0
        %v298 = vsel %vm263, %v198, 0
        %v301 = vsel %vm263, %v200, 0
        %v304 = vsel %vm263, %v202, 0
        %v307 = vsel %vm263, %v204, 0
        %v310 = vsel %vm263, %v206, 0
        %v313 = vsel %vm263, %v208, 0
        %v316 = vsel %vm263, %v210, 0
        %v319 = vsel %vm263, %v212, 0
        %v322 = vsel %vm263, %v214, 0
        %v325 = vsel %vm263, %v216, 0
        %v328 = vsel %vm263, %v218, 0
        %v331 = vsel %vm263, %v220, 0
        %v334 = vsel %vm263, %v222, 0
        %v337 = vsel %vm263, %v224, 0
        %v340 = vsel %vm263, %v226, 0
        %v343 = vsel %vm263, %v228, 0
        %v346 = vsel %vm263, %v230, 0
        %v349 = vsel %vm263, %v232, 0
        %v352 = vsel %vm263, %v234, 0
        %v355 = vsel %vm263, %v236, 0
        %v358 = vsel %vm263, %v238, 0
        %vm360 = vcmask 1042432
        %v362 = vsel %vm360, %v257, 0
        %364 = vmatprep.subr.mxu0 0.0
        %365 = vmatpush1.msra.mxu0 %v239
        %366 = vmatprep.subr.mxu0 0.0
        %367 = vmatpush1.msra.mxu0 %v240
        %368 = vmatprep.subr.mxu0 0.0
        %369 = vmatpush1.msra.mxu0 %v241
        %370 = vmatprep.subr.mxu0 0.0
        %371 = vmatpush1.msra.mxu0 %v242
        %372 = vmatprep.subr.mxu0 0.0
        %373 = vmatpush1.msra.mxu0 %v243
        %374 = vmatprep.subr.mxu0 0.0
        %375 = vmatpush1.msra.mxu0 %v244
        %376 = vmatprep.subr.mxu0 0.0
        %377 = vmatpush1.msra.mxu0 %v245
        %378 = vmatprep.subr.mxu0 0.0
        %379 = vmatpush1.msra.mxu0 %v246
        %380 = vmatprep.subr.mxu0 0.0
        %381 = vmatpush1.msra.mxu0 %v247
        %382 = vmatprep.subr.mxu0 0.0
        %383 = vmatpush1.msra.mxu0 %v248
        %384 = vmatprep.subr.mxu0 0.0
        %385 = vmatpush1.msra.mxu0 %v249
        %386 = vmatprep.subr.mxu0 0.0
        %387 = vmatpush1.msra.mxu0 %v250
        %388 = vmatprep.subr.mxu0 0.0
        %389 = vmatpush1.msra.mxu0 %v251
        %390 = vmatprep.subr.mxu0 0.0
        %391 = vmatpush1.msra.mxu0 %v252
        %392 = vmatprep.subr.mxu0 0.0
        %393 = vmatpush1.msra.mxu0 %v253
        %394 = vmatprep.subr.mxu0 0.0
        %395 = vmatpush1.msra.mxu0 %v254
        %396 = vmatprep.subr.mxu0 0.0
        %397 = vmatpush1.msra.mxu0 %v255
        %398 = vmatprep.subr.mxu0 0.0
        %399 = vmatpush1.msra.mxu0 %v256
        %400 = vmatprep.subr.mxu0 0.0
        %401 = vmatpush1.msra.mxu0 %v362
        %402 = vmatprep.subr.mxu0 0.0
        %403 = vmatpush1.msra.mxu0 0.0
        %404 = vmatprep.subr.mxu0 0.0
        %405 = vmatpush1.msra.mxu0 0.0
        %406 = vmatprep.subr.mxu0 0.0
        %407 = vmatpush1.msra.mxu0 0.0
        %408 = vmatprep.subr.mxu0 0.0
        %409 = vmatpush1.msra.mxu0 0.0
        %410 = vmatprep.subr.mxu0 0.0
        %411 = vmatpush1.msra.mxu0 0.0
        %412 = vmatprep.subr.mxu0 0.0
        %413 = vmatpush1.msra.mxu0 0.0
        %414 = vmatprep.subr.mxu0 0.0
        %415 = vmatpush1.msra.mxu0 0.0
        %416 = vmatprep.subr.mxu0 0.0
        %417 = vmatpush1.msra.mxu0 0.0
        %418 = vmatprep.subr.mxu0 0.0
        %419 = vmatpush1.msra.mxu0 0.0
        %420 = vmatprep.subr.mxu0 0.0
        %421 = vmatpush1.msra.mxu0 0.0
        %422 = vmatprep.subr.mxu0 0.0
        %423 = vmatpush1.msra.mxu0 0.0
        %424 = vmatprep.subr.mxu0 0.0
        %425 = vmatpush1.msra.mxu0 0.0
        %426 = vmatprep.subr.mxu0 0.0
        %427 = vmatpush1.msra.mxu0 0.0
        %428 = vmatprep.mubr.f32.mxu0 %v265
        %429 = vmatmul.mubr.f32.gmra.mrb[0].mxu0 %v175
        %v430 = vpop.f32.mrb[0].mxu0
        %v431 = vadd.f32 %v262, %v430
        %v432 = vpop.f32.mrb[0].mxu0
        %433 = vmatprep.mubr.f32.mxu0 %v268
        %434 = vmatmul.mubr.f32.gmra.mrb[0].mxu0 %v177
        %v435 = vpop.f32.mrb[0].mxu0
        %v436 = vadd.f32 %v262, %v435
        %v437 = vpop.f32.mrb[0].mxu0
        %438 = vmatprep.mubr.f32.mxu0 %v271
        %439 = vmatmul.mubr.f32.gmra.mrb[0].mxu0 %v179
        %v440 = vpop.f32.mrb[0].mxu0
        %v441 = vadd.f32 %v262, %v440
        %v442 = vpop.f32.mrb[0].mxu0
        %443 = vmatprep.mubr.f32.mxu0 %v274
        %444 = vmatmul.mubr.f32.gmra.mrb[0].mxu0 %v181
        %v445 = vpop.f32.mrb[0].mxu0
        %v446 = vadd.f32 %v262, %v445
        %v447 = vpop.f32.mrb[0].mxu0
        %448 = vmatprep.mubr.f32.mxu0 %v277
        %449 = vmatmul.mubr.f32.gmra.mrb[0].mxu0 %v183
        %v450 = vpop.f32.mrb[0].mxu0
        %v451 = vadd.f32 %v262, %v450
        %v452 = vpop.f32.mrb[0].mxu0
        %453 = vmatprep.mubr.f32.mxu0 %v280
        %454 = vmatmul.mubr.f32.gmra.mrb[0].mxu0 %v185
        %v455 = vpop.f32.mrb[0].mxu0
        %v456 = vadd.f32 %v262, %v455
        %v457 = vpop.f32.mrb[0].mxu0
        %458 = vmatprep.mubr.f32.mxu0 %v283
        %459 = vmatmul.mubr.f32.gmra.mrb[0].mxu0 %v187
        %v460 = vpop.f32.mrb[0].mxu0
        %v461 = vadd.f32 %v262, %v460
        %v462 = vpop.f32.mrb[0].mxu0
        %463 = vmatprep.mubr.f32.mxu0 %v286
        %464 = vmatmul.mubr.f32.gmra.mrb[0].mxu0 %v189
        %v465 = vpop.f32.mrb[0].mxu0
        %v466 = vadd.f32 %v262, %v465
        %v467 = vpop.f32.mrb[0].mxu0
        %468 = vmatprep.mubr.f32.mxu0 %v289
        %469 = vmatmul.mubr.f32.gmra.mrb[0].mxu0 %v191
        %v470 = vpop.f32.mrb[0].mxu0
        %v471 = vadd.f32 %v262, %v470
        %v472 = vpop.f32.mrb[0].mxu0
        %473 = vmatprep.mubr.f32.mxu0 %v292
        %474 = vmatmul.mubr.f32.gmra.mrb[0].mxu0 %v193
        %v475 = vpop.f32.mrb[0].mxu0
        %v476 = vadd.f32 %v262, %v475
        %v477 = vpop.f32.mrb[0].mxu0
        %478 = vmatprep.mubr.f32.mxu0 %v295
        %479 = vmatmul.mubr.f32.gmra.mrb[0].mxu0 %v195
        %v480 = vpop.f32.mrb[0].mxu0
        %v481 = vadd.f32 %v262, %v480
        %v482 = vpop.f32.mrb[0].mxu0
        %483 = vmatprep.mubr.f32.mxu0 %v298
        %484 = vmatmul.mubr.f32.gmra.mrb[0].mxu0 %v197
        %v485 = vpop.f32.mrb[0].mxu0
        %v486 = vadd.f32 %v262, %v485
        %v487 = vpop.f32.mrb[0].mxu0
        %488 = vmatprep.mubr.f32.mxu0 %v301
        %489 = vmatmul.mubr.f32.gmra.mrb[0].mxu0 %v199
        %v490 = vpop.f32.mrb[0].mxu0
        %v491 = vadd.f32 %v262, %v490
        %v492 = vpop.f32.mrb[0].mxu0
        %493 = vmatprep.mubr.f32.mxu0 %v304
        %494 = vmatmul.mubr.f32.gmra.mrb[0].mxu0 %v201
        %v495 = vpop.f32.mrb[0].mxu0
        %v496 = vadd.f32 %v262, %v495
        %v497 = vpop.f32.mrb[0].mxu0
        %498 = vmatprep.mubr.f32.mxu0 %v307
        %499 = vmatmul.mubr.f32.gmra.mrb[0].mxu0 %v203
        %v500 = vpop.f32.mrb[0].mxu0
        %v501 = vadd.f32 %v262, %v500
        %v502 = vpop.f32.mrb[0].mxu0
        %503 = vmatprep.mubr.f32.mxu0 %v310
        %504 = vmatmul.mubr.f32.gmra.mrb[0].mxu0 %v205
        %v505 = vpop.f32.mrb[0].mxu0
        %v506 = vadd.f32 %v262, %v505
        %v507 = vpop.f32.mrb[0].mxu0
        %508 = vmatprep.mubr.f32.mxu0 %v313
        %509 = vmatmul.mubr.f32.gmra.mrb[0].mxu0 %v207
        %v510 = vpop.f32.mrb[0].mxu0
        %v511 = vadd.f32 %v262, %v510
        %v512 = vpop.f32.mrb[0].mxu0
        %513 = vmatprep.mubr.f32.mxu0 %v316
        %514 = vmatmul.mubr.f32.gmra.mrb[0].mxu0 %v209
        %v515 = vpop.f32.mrb[0].mxu0
        %v516 = vadd.f32 %v262, %v515
        %v517 = vpop.f32.mrb[0].mxu0
        %518 = vmatprep.mubr.f32.mxu0 %v319
        %519 = vmatmul.mubr.f32.gmra.mrb[0].mxu0 %v211
        %v520 = vpop.f32.mrb[0].mxu0
        %v521 = vadd.f32 %v262, %v520
        %v522 = vpop.f32.mrb[0].mxu0
        %523 = vmatprep.mubr.f32.mxu0 %v322
        %524 = vmatmul.mubr.f32.gmra.mrb[0].mxu0 %v213
        %v525 = vpop.f32.mrb[0].mxu0
        %v526 = vadd.f32 %v262, %v525
        %v527 = vpop.f32.mrb[0].mxu0
        %528 = vmatprep.mubr.f32.mxu0 %v325
        %529 = vmatmul.mubr.f32.gmra.mrb[0].mxu0 %v215
        %v530 = vpop.f32.mrb[0].mxu0
        %v531 = vadd.f32 %v262, %v530
        %v532 = vpop.f32.mrb[0].mxu0
        %533 = vmatprep.mubr.f32.mxu0 %v328
        %534 = vmatmul.mubr.f32.gmra.mrb[0].mxu0 %v217
        %v535 = vpop.f32.mrb[0].mxu0
        %v536 = vadd.f32 %v262, %v535
        %v537 = vpop.f32.mrb[0].mxu0
        %538 = vmatprep.mubr.f32.mxu0 %v331
        %539 = vmatmul.mubr.f32.gmra.mrb[0].mxu0 %v219
        %v540 = vpop.f32.mrb[0].mxu0
        %v541 = vadd.f32 %v262, %v540
        %v542 = vpop.f32.mrb[0].mxu0
        %543 = vmatprep.mubr.f32.mxu0 %v334
        %544 = vmatmul.mubr.f32.gmra.mrb[0].mxu0 %v221
        %v545 = vpop.f32.mrb[0].mxu0
        %v546 = vadd.f32 %v262, %v545
        %v547 = vpop.f32.mrb[0].mxu0
        %548 = vmatprep.mubr.f32.mxu0 %v337
        %549 = vmatmul.mubr.f32.gmra.mrb[0].mxu0 %v223
        %v550 = vpop.f32.mrb[0].mxu0
        %v551 = vadd.f32 %v262, %v550
        %v552 = vpop.f32.mrb[0].mxu0
        %553 = vmatprep.mubr.f32.mxu0 %v340
        %554 = vmatmul.mubr.f32.gmra.mrb[0].mxu0 %v225
        %v555 = vpop.f32.mrb[0].mxu0
        %v556 = vadd.f32 %v262, %v555
        %v557 = vpop.f32.mrb[0].mxu0
        %558 = vmatprep.mubr.f32.mxu0 %v343
        %559 = vmatmul.mubr.f32.gmra.mrb[0].mxu0 %v227
        %v560 = vpop.f32.mrb[0].mxu0
        %v561 = vadd.f32 %v262, %v560
        %v562 = vpop.f32.mrb[0].mxu0
        %563 = vmatprep.mubr.f32.mxu0 %v346
        %564 = vmatmul.mubr.f32.gmra.mrb[0].mxu0 %v229
        %v565 = vpop.f32.mrb[0].mxu0
        %v566 = vadd.f32 %v262, %v565
        %v567 = vpop.f32.mrb[0].mxu0
        %568 = vmatprep.mubr.f32.mxu0 %v349
        %569 = vmatmul.mubr.f32.gmra.mrb[0].mxu0 %v231
        %v570 = vpop.f32.mrb[0].mxu0
        %v571 = vadd.f32 %v262, %v570
        %v572 = vpop.f32.mrb[0].mxu0
        %573 = vmatprep.mubr.f32.mxu0 %v352
        %574 = vmatmul.mubr.f32.gmra.mrb[0].mxu0 %v233
        %v575 = vpop.f32.mrb[0].mxu0
        %v576 = vadd.f32 %v262, %v575
        %v577 = vpop.f32.mrb[0].mxu0
        %578 = vmatprep.mubr.f32.mxu0 %v355
        %579 = vmatmul.mubr.f32.gmra.mrb[0].mxu0 %v235
        %v580 = vpop.f32.mrb[0].mxu0
        %v581 = vadd.f32 %v262, %v580
        %v582 = vpop.f32.mrb[0].mxu0
        %583 = vmatprep.mubr.f32.mxu0 %v358
        %584 = vmatmul.mubr.f32.gmra.mrb[0].mxu0 %v237
        %v585 = vpop.f32.mrb[0].mxu0
        %v586 = vadd.f32 %v262, %v585
        %v587 = vpop.f32.mrb[0].mxu0
        %588 = vdwg.mxu0
        %589 = vadd.xlane.f32.xlu0 %v431
        %v590 = vpop.xlane.xlu0 %589
        %591 = vadd.xlane.f32.xlu0 %v436
        %v592 = vpop.xlane.xlu0 %591
        %593 = vadd.xlane.f32.xlu0 %v441
        %v594 = vpop.xlane.xlu0 %593
        %595 = vadd.xlane.f32.xlu0 %v446
        %v596 = vpop.xlane.xlu0 %595
        %597 = vadd.xlane.f32.xlu0 %v451
        %v598 = vpop.xlane.xlu0 %597
        %599 = vadd.xlane.f32.xlu0 %v456
        %v600 = vpop.xlane.xlu0 %599
        %601 = vadd.xlane.f32.xlu0 %v461
        %v602 = vpop.xlane.xlu0 %601
        %603 = vadd.xlane.f32.xlu0 %v466
        %v604 = vpop.xlane.xlu0 %603
        %605 = vadd.xlane.f32.xlu0 %v471
        %v606 = vpop.xlane.xlu0 %605
        %607 = vadd.xlane.f32.xlu0 %v476
        %v608 = vpop.xlane.xlu0 %607
        %609 = vadd.xlane.f32.xlu0 %v481
        %v610 = vpop.xlane.xlu0 %609
        %611 = vadd.xlane.f32.xlu0 %v486
        %v612 = vpop.xlane.xlu0 %611
        %613 = vadd.xlane.f32.xlu0 %v491
        %v614 = vpop.xlane.xlu0 %613
        %615 = vadd.xlane.f32.xlu0 %v496
        %v616 = vpop.xlane.xlu0 %615
        %617 = vadd.xlane.f32.xlu0 %v501
        %v618 = vpop.xlane.xlu0 %617
        %619 = vadd.xlane.f32.xlu0 %v506
        %v620 = vpop.xlane.xlu0 %619
        %621 = vadd.xlane.f32.xlu0 %v511
        %v622 = vpop.xlane.xlu0 %621
        %623 = vadd.xlane.f32.xlu0 %v516
        %v624 = vpop.xlane.xlu0 %623
        %625 = vadd.xlane.f32.xlu0 %v521
        %v626 = vpop.xlane.xlu0 %625
        %627 = vadd.xlane.f32.xlu0 %v526
        %v628 = vpop.xlane.xlu0 %627
        %629 = vadd.xlane.f32.xlu0 %v531
        %v630 = vpop.xlane.xlu0 %629
        %631 = vadd.xlane.f32.xlu0 %v536
        %v632 = vpop.xlane.xlu0 %631
        %633 = vadd.xlane.f32.xlu0 %v541
        %v634 = vpop.xlane.xlu0 %633
        %635 = vadd.xlane.f32.xlu0 %v546
        %v636 = vpop.xlane.xlu0 %635
        %637 = vadd.xlane.f32.xlu0 %v551
        %v638 = vpop.xlane.xlu0 %637
        %639 = vadd.xlane.f32.xlu0 %v556
        %v640 = vpop.xlane.xlu0 %639
        %641 = vadd.xlane.f32.xlu0 %v561
        %v642 = vpop.xlane.xlu0 %641
        %643 = vadd.xlane.f32.xlu0 %v566
        %v644 = vpop.xlane.xlu0 %643
        %645 = vadd.xlane.f32.xlu0 %v571
        %v646 = vpop.xlane.xlu0 %645
        %647 = vadd.xlane.f32.xlu0 %v576
        %v648 = vpop.xlane.xlu0 %647
        %649 = vadd.xlane.f32.xlu0 %v581
        %v650 = vpop.xlane.xlu0 %649
        %651 = vadd.xlane.f32.xlu0 %v586
        %v652 = vpop.xlane.xlu0 %651
        %v653 = vrcp.pop 128.0
        %v654 = vmul.f32 %v590, %v653
        %v655 = vmul.f32 %v592, %v653
        %v656 = vmul.f32 %v594, %v653
        %v657 = vmul.f32 %v596, %v653
        %v658 = vmul.f32 %v598, %v653
        %v659 = vmul.f32 %v600, %v653
        %v660 = vmul.f32 %v602, %v653
        %v661 = vmul.f32 %v604, %v653
        %v662 = vmul.f32 %v606, %v653
        %v663 = vmul.f32 %v608, %v653
        %v664 = vmul.f32 %v610, %v653
        %v665 = vmul.f32 %v612, %v653
        %v666 = vmul.f32 %v614, %v653
        %v667 = vmul.f32 %v616, %v653
        %v668 = vmul.f32 %v618, %v653
        %v669 = vmul.f32 %v620, %v653
        %v670 = vmul.f32 %v622, %v653
        %v671 = vmul.f32 %v624, %v653
        %v672 = vmul.f32 %v626, %v653
        %v673 = vmul.f32 %v628, %v653
        %v674 = vmul.f32 %v630, %v653
        %v675 = vmul.f32 %v632, %v653
        %v676 = vmul.f32 %v634, %v653
        %v677 = vmul.f32 %v636, %v653
        %v678 = vmul.f32 %v638, %v653
        %v679 = vmul.f32 %v640, %v653
        %v680 = vmul.f32 %v642, %v653
        %v681 = vmul.f32 %v644, %v653
        %v682 = vmul.f32 %v646, %v653
        %v683 = vmul.f32 %v648, %v653
        %v684 = vmul.f32 %v650, %v653
        %v685 = vmul.f32 %v652, %v653
        %v686 = vsub.f32 %v431, %v654
        %v687 = vsub.f32 %v436, %v655
        %v688 = vsub.f32 %v441, %v656
        %v689 = vsub.f32 %v446, %v657
        %v690 = vsub.f32 %v451, %v658
        %v691 = vsub.f32 %v456, %v659
        %v692 = vsub.f32 %v461, %v660
        %v693 = vsub.f32 %v466, %v661
        %v694 = vsub.f32 %v471, %v662
        %v695 = vsub.f32 %v476, %v663
        %v696 = vsub.f32 %v481, %v664
        %v697 = vsub.f32 %v486, %v665
        %v698 = vsub.f32 %v491, %v666
        %v699 = vsub.f32 %v496, %v667
        %v700 = vsub.f32 %v501, %v668
        %v701 = vsub.f32 %v506, %v669
        %v702 = vsub.f32 %v511, %v670
        %v703 = vsub.f32 %v516, %v671
        %v704 = vsub.f32 %v521, %v672
        %v705 = vsub.f32 %v526, %v673
        %v706 = vsub.f32 %v531, %v674
        %v707 = vsub.f32 %v536, %v675
        %v708 = vsub.f32 %v541, %v676
        %v709 = vsub.f32 %v546, %v677
        %v710 = vsub.f32 %v551, %v678
        %v711 = vsub.f32 %v556, %v679
        %v712 = vsub.f32 %v561, %v680
        %v713 = vsub.f32 %v566, %v681
        %v714 = vsub.f32 %v571, %v682
        %v715 = vsub.f32 %v576, %v683
        %v716 = vsub.f32 %v581, %v684
        %v717 = vsub.f32 %v586, %v685
        %v718 = vmul.f32 %v686, %v686
        %v719 = vmul.f32 %v687, %v687
        %v720 = vmul.f32 %v688, %v688
        %v721 = vmul.f32 %v689, %v689
        %v722 = vmul.f32 %v690, %v690
        %v723 = vmul.f32 %v691, %v691
        %v724 = vmul.f32 %v692, %v692
        %v725 = vmul.f32 %v693, %v693
        %v726 = vmul.f32 %v694, %v694
        %v727 = vmul.f32 %v695, %v695
        %v728 = vmul.f32 %v696, %v696
        %v729 = vmul.f32 %v697, %v697
        %v730 = vmul.f32 %v698, %v698
        %v731 = vmul.f32 %v699, %v699
        %v732 = vmul.f32 %v700, %v700
        %v733 = vmul.f32 %v701, %v701
        %v734 = vmul.f32 %v702, %v702
        %v735 = vmul.f32 %v703, %v703
        %v736 = vmul.f32 %v704, %v704
        %v737 = vmul.f32 %v705, %v705
        %v738 = vmul.f32 %v706, %v706
        %v739 = vmul.f32 %v707, %v707
        %v740 = vmul.f32 %v708, %v708
        %v741 = vmul.f32 %v709, %v709
        %v742 = vmul.f32 %v710, %v710
        %v743 = vmul.f32 %v711, %v711
        %v744 = vmul.f32 %v712, %v712
        %v745 = vmul.f32 %v713, %v713
        %v746 = vmul.f32 %v714, %v714
        %v747 = vmul.f32 %v715, %v715
        %v748 = vmul.f32 %v716, %v716
        %v749 = vmul.f32 %v717, %v717
        %750 = vadd.xlane.f32.xlu0 %v718
        %v751 = vpop.xlane.xlu0 %750
        %752 = vadd.xlane.f32.xlu0 %v719
        %v753 = vpop.xlane.xlu0 %752
        %754 = vadd.xlane.f32.xlu0 %v720
        %v755 = vpop.xlane.xlu0 %754
        %756 = vadd.xlane.f32.xlu0 %v721
        %v757 = vpop.xlane.xlu0 %756
        %758 = vadd.xlane.f32.xlu0 %v722
        %v759 = vpop.xlane.xlu0 %758
        %760 = vadd.xlane.f32.xlu0 %v723
        %v761 = vpop.xlane.xlu0 %760
        %762 = vadd.xlane.f32.xlu0 %v724
        %v763 = vpop.xlane.xlu0 %762
        %764 = vadd.xlane.f32.xlu0 %v725
        %v765 = vpop.xlane.xlu0 %764
        %766 = vadd.xlane.f32.xlu0 %v726
        %v767 = vpop.xlane.xlu0 %766
        %768 = vadd.xlane.f32.xlu0 %v727
        %v769 = vpop.xlane.xlu0 %768
        %770 = vadd.xlane.f32.xlu0 %v728
        %v771 = vpop.xlane.xlu0 %770
        %772 = vadd.xlane.f32.xlu0 %v729
        %v773 = vpop.xlane.xlu0 %772
        %774 = vadd.xlane.f32.xlu0 %v730
        %v775 = vpop.xlane.xlu0 %774
        %776 = vadd.xlane.f32.xlu0 %v731
        %v777 = vpop.xlane.xlu0 %776
        %778 = vadd.xlane.f32.xlu0 %v732
        %v779 = vpop.xlane.xlu0 %778
        %780 = vadd.xlane.f32.xlu0 %v733
        %v781 = vpop.xlane.xlu0 %780
        %782 = vadd.xlane.f32.xlu0 %v734
        %v783 = vpop.xlane.xlu0 %782
        %784 = vadd.xlane.f32.xlu0 %v735
        %v785 = vpop.xlane.xlu0 %784
        %786 = vadd.xlane.f32.xlu0 %v736
        %v787 = vpop.xlane.xlu0 %786
        %788 = vadd.xlane.f32.xlu0 %v737
        %v789 = vpop.xlane.xlu0 %788
        %790 = vadd.xlane.f32.xlu0 %v738
        %v791 = vpop.xlane.xlu0 %790
        %792 = vadd.xlane.f32.xlu0 %v739
        %v793 = vpop.xlane.xlu0 %792
        %794 = vadd.xlane.f32.xlu0 %v740
        %v795 = vpop.xlane.xlu0 %794
        %796 = vadd.xlane.f32.xlu0 %v741
        %v797 = vpop.xlane.xlu0 %796
        %798 = vadd.xlane.f32.xlu0 %v742
        %v799 = vpop.xlane.xlu0 %798
        %800 = vadd.xlane.f32.xlu0 %v743
        %v801 = vpop.xlane.xlu0 %800
        %802 = vadd.xlane.f32.xlu0 %v744
        %v803 = vpop.xlane.xlu0 %802
        %804 = vadd.xlane.f32.xlu0 %v745
        %v805 = vpop.xlane.xlu0 %804
        %806 = vadd.xlane.f32.xlu0 %v746
        %v807 = vpop.xlane.xlu0 %806
        %808 = vadd.xlane.f32.xlu0 %v747
        %v809 = vpop.xlane.xlu0 %808
        %810 = vadd.xlane.f32.xlu0 %v748
        %v811 = vpop.xlane.xlu0 %810
        %812 = vadd.xlane.f32.xlu0 %v749
        %v813 = vpop.xlane.xlu0 %812
        %v814 = vmul.f32 %v751, %v653
        %v815 = vmul.f32 %v753, %v653
        %v816 = vmul.f32 %v755, %v653
        %v817 = vmul.f32 %v757, %v653
        %v818 = vmul.f32 %v759, %v653
        %v819 = vmul.f32 %v761, %v653
        %v820 = vmul.f32 %v763, %v653
        %v821 = vmul.f32 %v765, %v653
        %v822 = vmul.f32 %v767, %v653
        %v823 = vmul.f32 %v769, %v653
        %v824 = vmul.f32 %v771, %v653
        %v825 = vmul.f32 %v773, %v653
        %v826 = vmul.f32 %v775, %v653
        %v827 = vmul.f32 %v777, %v653
        %v828 = vmul.f32 %v779, %v653
        %v829 = vmul.f32 %v781, %v653
        %v830 = vmul.f32 %v783, %v653
        %v831 = vmul.f32 %v785, %v653
        %v832 = vmul.f32 %v787, %v653
        %v833 = vmul.f32 %v789, %v653
        %v834 = vmul.f32 %v791, %v653
        %v835 = vmul.f32 %v793, %v653
        %v836 = vmul.f32 %v795, %v653
        %v837 = vmul.f32 %v797, %v653
        %v838 = vmul.f32 %v799, %v653
        %v839 = vmul.f32 %v801, %v653
        %v840 = vmul.f32 %v803, %v653
        %v841 = vmul.f32 %v805, %v653
        %v842 = vmul.f32 %v807, %v653
        %v843 = vmul.f32 %v809, %v653
        %v844 = vmul.f32 %v811, %v653
        %v845 = vmul.f32 %v813, %v653
        %v846 = vadd.f32 %v814, 1e-05
        %v847 = vadd.f32 %v815, 1e-05
        %v848 = vadd.f32 %v816, 1e-05
        %v849 = vadd.f32 %v817, 1e-05
        %v850 = vadd.f32 %v818, 1e-05
        %v851 = vadd.f32 %v819, 1e-05
        %v852 = vadd.f32 %v820, 1e-05
        %v853 = vadd.f32 %v821, 1e-05
        %v854 = vadd.f32 %v822, 1e-05
        %v855 = vadd.f32 %v823, 1e-05
        %v856 = vadd.f32 %v824, 1e-05
        %v857 = vadd.f32 %v825, 1e-05
        %v858 = vadd.f32 %v826, 1e-05
        %v859 = vadd.f32 %v827, 1e-05
        %v860 = vadd.f32 %v828, 1e-05
        %v861 = vadd.f32 %v829, 1e-05
        %v862 = vadd.f32 %v830, 1e-05
        %v863 = vadd.f32 %v831, 1e-05
        %v864 = vadd.f32 %v832, 1e-05
        %v865 = vadd.f32 %v833, 1e-05
        %v866 = vadd.f32 %v834, 1e-05
        %v867 = vadd.f32 %v835, 1e-05
        %v868 = vadd.f32 %v836, 1e-05
        %v869 = vadd.f32 %v837, 1e-05
        %v870 = vadd.f32 %v838, 1e-05
        %v871 = vadd.f32 %v839, 1e-05
        %v872 = vadd.f32 %v840, 1e-05
        %v873 = vadd.f32 %v841, 1e-05
        %v874 = vadd.f32 %v842, 1e-05
        %v875 = vadd.f32 %v843, 1e-05
        %v876 = vadd.f32 %v844, 1e-05
        %v877 = vadd.f32 %v845, 1e-05
        %v878 = vrsqrt.pop %v846
        %v879 = vrsqrt.pop %v847
        %v880 = vrsqrt.pop %v848
        %v881 = vrsqrt.pop %v849
        %v882 = vrsqrt.pop %v850
        %v883 = vrsqrt.pop %v851
        %v884 = vrsqrt.pop %v852
        %v885 = vrsqrt.pop %v853
        %v886 = vrsqrt.pop %v854
        %v887 = vrsqrt.pop %v855
        %v888 = vrsqrt.pop %v856
        %v889 = vrsqrt.pop %v857
        %v890 = vrsqrt.pop %v858
        %v891 = vrsqrt.pop %v859
        %v892 = vrsqrt.pop %v860
        %v893 = vrsqrt.pop %v861
        %v894 = vrsqrt.pop %v862
        %v895 = vrsqrt.pop %v863
        %v896 = vrsqrt.pop %v864
        %v897 = vrsqrt.pop %v865
        %v898 = vrsqrt.pop %v866
        %v899 = vrsqrt.pop %v867
        %v900 = vrsqrt.pop %v868
        %v901 = vrsqrt.pop %v869
        %v902 = vrsqrt.pop %v870
        %v903 = vrsqrt.pop %v871
        %v904 = vrsqrt.pop %v872
        %v905 = vrsqrt.pop %v873
        %v906 = vrsqrt.pop %v874
        %v907 = vrsqrt.pop %v875
        %v908 = vrsqrt.pop %v876
        %v909 = vrsqrt.pop %v877
        %v910 = vmul.f32 %v686, %v878
        %v911 = vmul.f32 %v687, %v879
        %v912 = vmul.f32 %v688, %v880
        %v913 = vmul.f32 %v689, %v881
        %v914 = vmul.f32 %v690, %v882
        %v915 = vmul.f32 %v691, %v883
        %v916 = vmul.f32 %v692, %v884
        %v917 = vmul.f32 %v693, %v885
        %v918 = vmul.f32 %v694, %v886
        %v919 = vmul.f32 %v695, %v887
        %v920 = vmul.f32 %v696, %v888
        %v921 = vmul.f32 %v697, %v889
        %v922 = vmul.f32 %v698, %v890
        %v923 = vmul.f32 %v699, %v891
        %v924 = vmul.f32 %v700, %v892
        %v925 = vmul.f32 %v701, %v893
        %v926 = vmul.f32 %v702, %v894
        %v927 = vmul.f32 %v703, %v895
        %v928 = vmul.f32 %v704, %v896
        %v929 = vmul.f32 %v705, %v897
        %v930 = vmul.f32 %v706, %v898
        %v931 = vmul.f32 %v707, %v899
        %v932 = vmul.f32 %v708, %v900
        %v933 = vmul.f32 %v709, %v901
        %v934 = vmul.f32 %v710, %v902
        %v935 = vmul.f32 %v711, %v903
        %v936 = vmul.f32 %v712, %v904
        %v937 = vmul.f32 %v713, %v905
        %v938 = vmul.f32 %v714, %v906
        %v939 = vmul.f32 %v715, %v907
        %v940 = vmul.f32 %v716, %v908
        %v941 = vmul.f32 %v717, %v909
        %v942 = vld [vmem:[%s2 + $0x1] sm:$0x1]
        %v943 = vlaneseq
        %v944 = vshrl.u32 %v943, 7
        %v945 = vsub.s32 0, %v944
        %v946 = vrot.slane %v942, %v945
        %v947 = vmul.f32 %v910, %v946
        %v948 = vmul.f32 %v911, %v946
        %v949 = vmul.f32 %v912, %v946
        %v950 = vmul.f32 %v913, %v946
        %v951 = vmul.f32 %v914, %v946
        %v952 = vmul.f32 %v915, %v946
        %v953 = vmul.f32 %v916, %v946
        %v954 = vmul.f32 %v917, %v946
        %v955 = vmul.f32 %v918, %v946
        %v956 = vmul.f32 %v919, %v946
        %v957 = vmul.f32 %v920, %v946
        %v958 = vmul.f32 %v921, %v946
        %v959 = vmul.f32 %v922, %v946
        %v960 = vmul.f32 %v923, %v946
        %v961 = vmul.f32 %v924, %v946
        %v962 = vmul.f32 %v925, %v946
        %v963 = vmul.f32 %v926, %v946
        %v964 = vmul.f32 %v927, %v946
        %v965 = vmul.f32 %v928, %v946
        %v966 = vmul.f32 %v929, %v946
        %v967 = vmul.f32 %v930, %v946
        %v968 = vmul.f32 %v931, %v946
        %v969 = vmul.f32 %v932, %v946
        %v970 = vmul.f32 %v933, %v946
        %v971 = vmul.f32 %v934, %v946
        %v972 = vmul.f32 %v935, %v946
        %v973 = vmul.f32 %v936, %v946
        %v974 = vmul.f32 %v937, %v946
        %v975 = vmul.f32 %v938, %v946
        %v976 = vmul.f32 %v939, %v946
        %v977 = vmul.f32 %v940, %v946
        %v978 = vmul.f32 %v941, %v946
        %v979 = vld [vmem:[%s2 + $0x2] sm:$0x1]
        %v980 = vlaneseq
        %v981 = vshrl.u32 %v980, 7
        %v982 = vsub.s32 0, %v981
        %v983 = vrot.slane %v979, %v982
        %v984 = vadd.f32 %v947, %v983
        %v985 = vadd.f32 %v948, %v983
        %v986 = vadd.f32 %v949, %v983
        %v987 = vadd.f32 %v950, %v983
        %v988 = vadd.f32 %v951, %v983
        %v989 = vadd.f32 %v952, %v983
        %v990 = vadd.f32 %v953, %v983
        %v991 = vadd.f32 %v954, %v983
        %v992 = vadd.f32 %v955, %v983
        %v993 = vadd.f32 %v956, %v983
        %v994 = vadd.f32 %v957, %v983
        %v995 = vadd.f32 %v958, %v983
        %v996 = vadd.f32 %v959, %v983
        %v997 = vadd.f32 %v960, %v983
        %v998 = vadd.f32 %v961, %v983
        %v999 = vadd.f32 %v962, %v983
        %v1000 = vadd.f32 %v963, %v983
        %v1001 = vadd.f32 %v964, %v983
        %v1002 = vadd.f32 %v965, %v983
        %v1003 = vadd.f32 %v966, %v983
        %v1004 = vadd.f32 %v967, %v983
        %v1005 = vadd.f32 %v968, %v983
        %v1006 = vadd.f32 %v969, %v983
        %v1007 = vadd.f32 %v970, %v983
        %v1008 = vadd.f32 %v971, %v983
        %v1009 = vadd.f32 %v972, %v983
        %v1010 = vadd.f32 %v973, %v983
        %v1011 = vadd.f32 %v974, %v983
        %v1012 = vadd.f32 %v975, %v983
        %v1013 = vadd.f32 %v976, %v983
        %v1014 = vadd.f32 %v977, %v983
        %v1015 = vadd.f32 %v978, %v983
        %1016 = vst [vmem:[%s166] sm:$0xff] %v984
        %1017 = vst [vmem:[%s166 + $0x8] sm:$0xff] %v985
        %1018 = vst [vmem:[%s166 + $0x10] sm:$0xff] %v986
        %1019 = vst [vmem:[%s166 + $0x18] sm:$0xff] %v987
        %1020 = vst [vmem:[%s166 + $0x20] sm:$0xff] %v988
        %1021 = vst [vmem:[%s166 + $0x28] sm:$0xff] %v989
        %1022 = vst [vmem:[%s166 + $0x30] sm:$0xff] %v990
        %1023 = vst [vmem:[%s166 + $0x38] sm:$0xff] %v991
        %1024 = vst [vmem:[%s166 + $0x40] sm:$0xff] %v992
        %1025 = vst [vmem:[%s166 + $0x48] sm:$0xff] %v993
        %1026 = vst [vmem:[%s166 + $0x50] sm:$0xff] %v994
        %1027 = vst [vmem:[%s166 + $0x58] sm:$0xff] %v995
        %1028 = vst [vmem:[%s166 + $0x60] sm:$0xff] %v996
        %1029 = vst [vmem:[%s166 + $0x68] sm:$0xff] %v997
        %1030 = vst [vmem:[%s166 + $0x70] sm:$0xff] %v998
        %1031 = vst [vmem:[%s166 + $0x78] sm:$0xff] %v999
        %1032 = vst [vmem:[%s166 + $0x80] sm:$0xff] %v1000
        %1033 = vst [vmem:[%s166 + $0x88] sm:$0xff] %v1001
        %1034 = vst [vmem:[%s166 + $0x90] sm:$0xff] %v1002
        %1035 = vst [vmem:[%s166 + $0x98] sm:$0xff] %v1003
        %1036 = vst [vmem:[%s166 + $0xa0] sm:$0xff] %v1004
        %1037 = vst [vmem:[%s166 + $0xa8] sm:$0xff] %v1005
        %1038 = vst [vmem:[%s166 + $0xb0] sm:$0xff] %v1006
        %1039 = vst [vmem:[%s166 + $0xb8] sm:$0xff] %v1007
        %1040 = vst [vmem:[%s166 + $0xc0] sm:$0xff] %v1008
        %1041 = vst [vmem:[%s166 + $0xc8] sm:$0xff] %v1009
        %1042 = vst [vmem:[%s166 + $0xd0] sm:$0xff] %v1010
        %1043 = vst [vmem:[%s166 + $0xd8] sm:$0xff] %v1011
        %1044 = vst [vmem:[%s166 + $0xe0] sm:$0xff] %v1012
        %1045 = vst [vmem:[%s166 + $0xe8] sm:$0xff] %v1013
        %1046 = vst [vmem:[%s166 + $0xf0] sm:$0xff] %v1014
        %1047 = vst [vmem:[%s166 + $0xf8] sm:$0xff] %v1015
        %s1048 = sand.u32 %s93, 1
        %s1049 = scalar_lea.sflag [#allocation3], %s1048
        %s1050 = sand.u32 %s93, 1
        %s1051 = smul.addr %s1050, 256
        %s1052 = scalar_lea.vmem [#allocation2], %s1051
        // Predicated region
        $region33: #{tpu_custom_call.1} parent=31 // pred_check
          %p1053 = pneg %p103
        $region34: #{tpu_custom_call.1} parent=31 // pred_check_branch
          %1055 = sbr.rel (%p1053) target = $region36
        $region35: #{tpu_custom_call.1} parent=31 // pred_region
          %s1056 = smul.u32 32, %s17
          %s1058 = ssub.s32 4096, 4096
          %1059 = vsyncadd %s1049, %s1058
          %s1060 = smul.addr %s1056, 128
          %s1061 = scalar_lea.hbm %s3, %s1060
          %s1062 = sshll.u32 %s1052, 4
          %s1063 = int_to_ptr.vmem [resolvable:$true] %s1062
          %1068 = dma.vmem_to_hbm [thread:$0]  %s1063, 4096, %s1061, %s1049, 128, 128, 8
        $region36: #{tpu_custom_call.1} parent=31 // pred_fallthru
          _
      $region32: #{tpu_custom_call.1} parent=5 // pred_fallthru
        _
      %p1069 = scmp.le.s32.totalorder 2, %s12
      // Predicated region
      $region37: #{tpu_custom_call.1} parent=5 // pred_check
        %p1070 = pneg %p1069
      $region38: #{tpu_custom_call.1} parent=5 // pred_check_branch
        %1072 = sbr.rel (%p1070) target = $region40
      $region39: #{tpu_custom_call.1} parent=5 // pred_region
        %s1073 = ssub.s32 %s12, 2
        // Predicated region
        $region41: #{tpu_custom_call.1} parent=39 // pred_check
          %p1074 = pneg %p109
        $region42: #{tpu_custom_call.1} parent=39 // pred_check_branch
          %1076 = sbr.rel (%p1074) target = $region44
        $region43: #{tpu_custom_call.1} parent=39 // pred_region
          %s1077 = sand.u32 %s94, 1
          %s1078 = scalar_lea.sflag [#allocation3], %s1077
          %s1079 = sand.u32 %s94, 1
          %s1080 = smul.addr %s1079, 256
          %s1081 = scalar_lea.vmem [#allocation2], %s1080
          %1082 = dma.done %s1078, 4096
        $region44: #{tpu_custom_call.1} parent=39 // pred_fallthru
          _
      $region40: #{tpu_custom_call.1} parent=5 // pred_fallthru
        _
    $region6: #{tpu_custom_call.1} parent=1 // loop_footer
      %s16 = sadd.s32 1, %s12
    $region7: #{tpu_custom_call.1} parent=1 // loop_footer_branch
      %11 = sbr.rel target = $region3
    $region8: #{tpu_custom_call.1} parent=1 // loop_exit
      _
    %1083 = vsyncpa [#allocation3], 1
    %s1084 = scalar_lea.sflag [#allocation3], 1
    %1085 = vsyncpa %s1084, 1

</llo_original>
